<compile_context>
chip_gen: v6e
topology: v6e:2x2x1
jax: 0.10.0
libtpu: 0.0.40
codegen_flags: <defaults>
</compile_context>

<pallas_src>
import jax
import jax.numpy as jnp
from jax import lax
from jax.experimental import pallas as pl
from jax.experimental.pallas import tpu as pltpu

# ---- model hyperparameters (small, consistent with the module) ----
VOCAB_SIZE = 50
EMBED_DIM = 32
NUM_FILTERS = 8
FILTER_SIZES = (2, 3, 4)
NUM_CLASSES = 4
PADDING_IDX = 0
DROPOUT_RATE = 0.5  # identity at inference

BATCH = 2
SEQ_LEN = 16

# ---- lane-dense padded sizes ----
LANE = 128
FS_MAX = max(FILTER_SIZES)
V_PAD = LANE                                   # vocab (50) -> 128 lanes
F_PAD = LANE                                   # 3*NUM_FILTERS (24) -> 128 lanes
C_PAD = LANE                                   # NUM_CLASSES (4) -> 128 lanes
K_CONV = FS_MAX * EMBED_DIM                    # 128 (per-tap packed conv rows)
K_BIG = FS_MAX * V_PAD                         # 512: composed contraction depth
T_MAX = SEQ_LEN - min(FILTER_SIZES) + 1        # longest valid conv length (15)
T_PAD = ((T_MAX + 7) // 8) * 8                 # 16, sublane aligned
L_PAD = ((T_PAD + FS_MAX - 1 + 7) // 8) * 8    # 24 padded token positions
AUX_ROWS = T_PAD + 8                           # 24: mask rows + bias rows


def cnn_kernel(ids_ref, w_ref, aux_ref, out_ref):
    """Fused one-hot embed+conv, ReLU, masked max-pool, FC — all lane-dense.

    ids_ref : (B, L_PAD)            int32 token ids (padded with PADDING_IDX)
    w_ref   : (K_BIG + F_PAD, F_PAD) bf16
              rows [0, 512)  : embedding-composed conv weight
              rows [512, 640): FC weight (zero-padded rows/cols)
    aux_ref : (AUX_ROWS, F_PAD) f32
              rows [0, T_PAD): 0/1 time-validity mask (0 on pad feature cols)
              row  T_PAD     : packed conv bias
              row  T_PAD + 1 : packed FC bias
    out_ref : (B, C_PAD) f32 lane-dense logits (wrapper slices to NUM_CLASSES)
    """
    ids = ids_ref[...]                                    # (B, L_PAD) int32
    B = ids.shape[0]

    aux = aux_ref[...]                                    # (24, 128) f32
    mask = aux[:T_PAD, :]                                 # (T_PAD, 128)
    b_conv = aux[T_PAD:T_PAD + 1, :]                      # (1, 128)
    b_fc = aux[T_PAD + 1:T_PAD + 2, :]                    # (1, 128)

    # One-hot the FS_MAX token windows -> (B, T_PAD, 512).  Each 128-lane
    # block k holds the one-hot of ids[:, t+k]; blocks are concatenated at
    # 128-aligned lane boundaries (no relayout).  Taps k >= fs for shorter
    # filters hit zero rows of the composed weight, so they contribute 0.
    iota_v = lax.broadcasted_iota(jnp.int32, (B, T_PAD, V_PAD), 2)
    pieces = []
    for k in range(FS_MAX):
        tok = ids[:, k:k + T_PAD]                         # (B, T_PAD) int32
        pieces.append((tok[:, :, None] == iota_v).astype(jnp.float32))
    onehot = jnp.concatenate(pieces, axis=-1)             # (B, T_PAD, 512)
    onehot2d = onehot.reshape(B * T_PAD, K_BIG).astype(jnp.bfloat16)

    # Single K=512 MXU contraction: conv activations for all filter sizes.
    w_big = w_ref[:K_BIG, :]                              # (512, 128) bf16
    conv = jnp.dot(onehot2d, w_big,
                   preferred_element_type=jnp.float32)    # (B*T_PAD, 128) f32
    conv = jnp.maximum(conv + b_conv, 0.0)                # bias + ReLU (f32)

    # Mask invalid window positions (post-ReLU, so zeros never win the max),
    # then max-pool over time.
    conv = conv.reshape(B, T_PAD, F_PAD) * mask[None, :, :]
    pooled = jnp.max(conv, axis=1)                        # (B, 128) f32

    # Dropout is identity at inference.  FC on the packed lane-dense weight.
    w_fc = w_ref[K_BIG:, :]                               # (128, 128) bf16
    logits = jnp.dot(pooled.astype(jnp.bfloat16), w_fc,
                     preferred_element_type=jnp.float32) + b_fc
    out_ref[...] = logits.astype(out_ref.dtype)


def init_params(key):
    """Deterministic synthetic parameters with the same shapes as the module."""
    n_keys = 1 + 2 * len(FILTER_SIZES) + 2
    ks = jax.random.split(key, n_keys)
    emb_table = 0.1 * jax.random.normal(ks[0], (VOCAB_SIZE, EMBED_DIM), jnp.float32)
    emb_table = emb_table.at[PADDING_IDX].set(0.0)  # padding_idx row is zero
    conv_ws, conv_bs = [], []
    for i, fs in enumerate(FILTER_SIZES):
        w = 0.1 * jax.random.normal(
            ks[1 + 2 * i], (NUM_FILTERS, 1, fs, EMBED_DIM), jnp.float32)
        b = 0.1 * jax.random.normal(ks[2 + 2 * i], (NUM_FILTERS,), jnp.float32)
        conv_ws.append(w)
        conv_bs.append(b)
    wfc = 0.1 * jax.random.normal(
        ks[-2], (NUM_CLASSES, len(FILTER_SIZES) * NUM_FILTERS), jnp.float32)
    bfc = 0.1 * jax.random.normal(ks[-1], (NUM_CLASSES,), jnp.float32)
    return emb_table, conv_ws, conv_bs, wfc, bfc


def pack_params(emb_table, conv_ws, conv_bs, wfc, bfc):
    """One-time repack: compose embedding into conv taps, build lane-dense slabs."""
    table_p = jnp.zeros((V_PAD, EMBED_DIM), jnp.float32).at[:VOCAB_SIZE].set(emb_table)

    w_conv = jnp.zeros((K_CONV, F_PAD), jnp.float32)
    b_conv = jnp.zeros((F_PAD,), jnp.float32)
    mask = jnp.zeros((T_PAD, F_PAD), jnp.float32)
    for i, fs in enumerate(FILTER_SIZES):
        lo, hi = i * NUM_FILTERS, (i + 1) * NUM_FILTERS
        # PyTorch conv weight (F, 1, fs, E) -> rows k*E+e, cols f
        blk = jnp.transpose(conv_ws[i][:, 0, :, :], (1, 2, 0)).reshape(
            fs * EMBED_DIM, NUM_FILTERS)
        w_conv = w_conv.at[:fs * EMBED_DIM, lo:hi].set(blk)
        b_conv = b_conv.at[lo:hi].set(conv_bs[i])
        mask = mask.at[:SEQ_LEN - fs + 1, lo:hi].set(1.0)

    # Pre-compose embedding with the conv taps (exact one-time f32 matmul):
    #   W_big[k*V_PAD + v, f] = sum_e table[v, e] * w_conv[k*E + e, f]
    w_big = jnp.concatenate(
        [jnp.dot(table_p, w_conv[k * EMBED_DIM:(k + 1) * EMBED_DIM, :],
                 precision=lax.Precision.HIGHEST)
         for k in range(FS_MAX)], axis=0)                 # (512, 128)

    n_feat = len(FILTER_SIZES) * NUM_FILTERS
    w_fc = jnp.zeros((F_PAD, C_PAD), jnp.float32).at[:n_feat, :NUM_CLASSES].set(wfc.T)

    # Single bf16 MXU weight slab; single f32 aux slab (mask + both biases).
    w_all = jnp.concatenate([w_big, w_fc], axis=0).astype(jnp.bfloat16)  # (640, 128)
    aux = jnp.zeros((AUX_ROWS, F_PAD), jnp.float32)
    aux = aux.at[:T_PAD, :].set(mask)
    aux = aux.at[T_PAD, :].set(b_conv)
    aux = aux.at[T_PAD + 1, :NUM_CLASSES].set(bfc)
    return w_all, aux


@jax.jit
def cnn_forward(packed, input_ids, attention_mask=None):
    del attention_mask  # unused, exactly as in the reference forward()
    w_all, aux = packed
    # The packed time-mask is baked for SEQ_LEN; guard against silent misuse.
    assert input_ids.shape[1] == SEQ_LEN, "packed params were built for SEQ_LEN"
    B = input_ids.shape[0]
    ids = jnp.pad(input_ids.astype(jnp.int32),
                  ((0, 0), (0, L_PAD - SEQ_LEN)),
                  constant_values=PADDING_IDX)            # tiny XLA op
    vmem = pl.BlockSpec(memory_space=pltpu.MemorySpace.VMEM)
    out = pl.pallas_call(
        cnn_kernel,
        out_shape=jax.ShapeDtypeStruct((B, C_PAD), jnp.float32),
        in_specs=[vmem, vmem, vmem],
        out_specs=vmem,
    )(ids, w_all, aux)
    return out[:, :NUM_CLASSES]


def reference_forward(raw_params, input_ids):
    """Pure-JAX mirror of the PyTorch module (for in-script validation)."""
    emb_table, conv_ws, conv_bs, wfc, bfc = raw_params
    emb = emb_table[input_ids]                            # (B, L, E)
    pooled = []
    for i, fs in enumerate(FILTER_SIZES):
        w = conv_ws[i][:, 0]                              # (F, fs, E)
        T = SEQ_LEN - fs + 1
        conv = jnp.stack(
            [jnp.einsum("bke,fke->bf", emb[:, t:t + fs, :], w,
                        precision=lax.Precision.HIGHEST) for t in range(T)],
            axis=1) + conv_bs[i][None, None, :]           # (B, T, F)
        pooled.append(jnp.max(jnp.maximum(conv, 0.0), axis=1))
    feats = jnp.concatenate(pooled, axis=-1)
    return jnp.dot(feats, wfc.T, precision=lax.Precision.HIGHEST) + bfc


if __name__ == "__main__":
    key = jax.random.PRNGKey(0)
    k_param, k_ids = jax.random.split(key)

    raw = init_params(k_param)
    packed = pack_params(*raw)

    input_ids = jax.random.randint(k_ids, (BATCH, SEQ_LEN), 0, VOCAB_SIZE, jnp.int32)
    # make a few trailing tokens padding (exercises padding_idx zero rows)
    input_ids = input_ids.at[:, -3:].set(PADDING_IDX)
    attention_mask = (input_ids != PADDING_IDX).astype(jnp.int32)  # unused by forward

    logits = cnn_forward(packed, input_ids, attention_mask)
    jax.block_until_ready(logits)
    assert logits.shape == (BATCH, NUM_CLASSES)

    ref = reference_forward(raw, input_ids)
    err = float(jnp.max(jnp.abs(logits - ref)))
    # bf16 MXU operands -> expect ~1e-3 level error vs the f32 reference
    assert err < 1e-2, f"mismatch vs pure-JAX reference: {err}"
    print("KERNEL_OK")
</pallas_src>

<mosaic_0001>
module attributes {stable_mosaic.version = 11 : i64} {
  func.func @cnn_kernel(%arg0: memref<2x24xi32, #tpu.memory_space<vmem>>, %arg1: memref<640x128xbf16, #tpu.memory_space<vmem>>, %arg2: memref<24x128xf32, #tpu.memory_space<vmem>>, %arg3: memref<2x128xf32, #tpu.memory_space<vmem>>) attributes {dimension_semantics = [], scalar_prefetch = 0 : i64, scratch_operands = 0 : i64, tpu.core_type = #tpu.core_type<tc>} {
    %c0 = arith.constant 0 : index
    %c0_0 = arith.constant 0 : index
    %0 = vector.load %arg0[%c0, %c0_0] : memref<2x24xi32, #tpu.memory_space<vmem>>, vector<2x24xi32>
    %c0_1 = arith.constant 0 : index
    %c0_2 = arith.constant 0 : index
    %1 = vector.load %arg2[%c0_1, %c0_2] : memref<24x128xf32, #tpu.memory_space<vmem>>, vector<24x128xf32>
    %2 = vector.extract_strided_slice %1 {offsets = [0, 0], sizes = [16, 128], strides = [1, 1]} : vector<24x128xf32> to vector<16x128xf32>
    %3 = vector.extract_strided_slice %1 {offsets = [16, 0], sizes = [1, 128], strides = [1, 1]} : vector<24x128xf32> to vector<1x128xf32>
    %4 = vector.extract_strided_slice %1 {offsets = [17, 0], sizes = [1, 128], strides = [1, 1]} : vector<24x128xf32> to vector<1x128xf32>
    %5 = tpu.iota {dimensions = array<i32: 2>} : vector<2x16x128xi32>
    %6 = vector.extract_strided_slice %0 {offsets = [0, 0], sizes = [2, 16], strides = [1, 1]} : vector<2x24xi32> to vector<2x16xi32>
    %7 = vector.shape_cast %6 : vector<2x16xi32> to vector<2x16x1xi32>
    %8 = vector.broadcast %7 : vector<2x16x1xi32> to vector<2x16x128xi32>
    %9 = arith.cmpi eq, %8, %5 : vector<2x16x128xi32>
    %10 = arith.extui %9 : vector<2x16x128xi1> to vector<2x16x128xi32>
    %11 = arith.sitofp %10 : vector<2x16x128xi32> to vector<2x16x128xf32>
    %12 = vector.extract_strided_slice %0 {offsets = [0, 1], sizes = [2, 16], strides = [1, 1]} : vector<2x24xi32> to vector<2x16xi32>
    %13 = vector.shape_cast %12 : vector<2x16xi32> to vector<2x16x1xi32>
    %14 = vector.broadcast %13 : vector<2x16x1xi32> to vector<2x16x128xi32>
    %15 = arith.cmpi eq, %14, %5 : vector<2x16x128xi32>
    %16 = arith.extui %15 : vector<2x16x128xi1> to vector<2x16x128xi32>
    %17 = arith.sitofp %16 : vector<2x16x128xi32> to vector<2x16x128xf32>
    %18 = vector.extract_strided_slice %0 {offsets = [0, 2], sizes = [2, 16], strides = [1, 1]} : vector<2x24xi32> to vector<2x16xi32>
    %19 = vector.shape_cast %18 : vector<2x16xi32> to vector<2x16x1xi32>
    %20 = vector.broadcast %19 : vector<2x16x1xi32> to vector<2x16x128xi32>
    %21 = arith.cmpi eq, %20, %5 : vector<2x16x128xi32>
    %22 = arith.extui %21 : vector<2x16x128xi1> to vector<2x16x128xi32>
    %23 = arith.sitofp %22 : vector<2x16x128xi32> to vector<2x16x128xf32>
    %24 = vector.extract_strided_slice %0 {offsets = [0, 3], sizes = [2, 16], strides = [1, 1]} : vector<2x24xi32> to vector<2x16xi32>
    %25 = vector.shape_cast %24 : vector<2x16xi32> to vector<2x16x1xi32>
    %26 = vector.broadcast %25 : vector<2x16x1xi32> to vector<2x16x128xi32>
    %27 = arith.cmpi eq, %26, %5 : vector<2x16x128xi32>
    %28 = arith.extui %27 : vector<2x16x128xi1> to vector<2x16x128xi32>
    %29 = arith.sitofp %28 : vector<2x16x128xi32> to vector<2x16x128xf32>
    %30 = tpu.concatenate %11, %17, %23, %29 in 2 : vector<2x16x128xf32>, vector<2x16x128xf32>, vector<2x16x128xf32>, vector<2x16x128xf32> -> vector<2x16x512xf32>
    %31 = vector.shape_cast %30 : vector<2x16x512xf32> to vector<32x512xf32>
    %32 = arith.truncf %31 : vector<32x512xf32> to vector<32x512xbf16>
    %c0_3 = arith.constant 0 : index
    %c0_4 = arith.constant 0 : index
    %33 = vector.load %arg1[%c0_3, %c0_4] : memref<640x128xbf16, #tpu.memory_space<vmem>>, vector<512x128xbf16>
    %cst = arith.constant dense<0.000000e+00> : vector<32x128xf32>
    %34 = tpu.matmul %32, %33, %cst {dimension_numbers = #tpu.dot_dimension_numbers<[1], [0], [0], [1], [0, 0, 1, 1], [], []>} : vector<32x512xbf16>, vector<512x128xbf16>, vector<32x128xf32> -> vector<32x128xf32>
    %35 = vector.broadcast %3 : vector<1x128xf32> to vector<32x128xf32>
    %36 = arith.addf %34, %35 : vector<32x128xf32>
    %cst_5 = arith.constant 0.000000e+00 : f32
    %37 = vector.broadcast %cst_5 : f32 to vector<32x128xf32>
    %38 = arith.maximumf %36, %37 : vector<32x128xf32>
    %39 = vector.shape_cast %38 : vector<32x128xf32> to vector<2x16x128xf32>
    %40 = vector.shape_cast %2 : vector<16x128xf32> to vector<1x16x128xf32>
    %41 = vector.broadcast %40 : vector<1x16x128xf32> to vector<2x16x128xf32>
    %42 = arith.mulf %39, %41 : vector<2x16x128xf32>
    %cst_6 = arith.constant dense<0xFF800000> : vector<2x128xf32>
    %43 = vector.multi_reduction <maximumf>, %42, %cst_6 [1] : vector<2x16x128xf32> to vector<2x128xf32>
    %c512 = arith.constant 512 : index
    %c0_7 = arith.constant 0 : index
    %44 = vector.load %arg1[%c512, %c0_7] : memref<640x128xbf16, #tpu.memory_space<vmem>>, vector<128x128xbf16>
    %45 = arith.truncf %43 : vector<2x128xf32> to vector<2x128xbf16>
    %cst_8 = arith.constant dense<0.000000e+00> : vector<2x128xf32>
    %46 = tpu.matmul %45, %44, %cst_8 {dimension_numbers = #tpu.dot_dimension_numbers<[1], [0], [0], [1], [0, 0, 1, 1], [], []>} : vector<2x128xbf16>, vector<128x128xbf16>, vector<2x128xf32> -> vector<2x128xf32>
    %47 = vector.broadcast %4 : vector<1x128xf32> to vector<2x128xf32>
    %48 = arith.addf %46, %47 : vector<2x128xf32>
    %c0_9 = arith.constant 0 : index
    %c0_10 = arith.constant 0 : index
    %49 = vector.load %arg3[%c0_9, %c0_10] : memref<2x128xf32, #tpu.memory_space<vmem>>, vector<2x128xf32>
    tpu.vector_store %arg3[%c0_9, %c0_10], %48 {strides = array<i32>} : memref<2x128xf32, #tpu.memory_space<vmem>>, vector<2x128xf32>,
    return
  }
}

</mosaic_0001>

<llo_original>
// kernel: cnn_forward.1
$region0: #{cnn_forward.1}
  #allocation0 [shape = 'u32[]', space=smem, size = 0x4, offset = 0x4, fixed_abs, tag = 'smem constant byte address 0x4 - core index']
  #allocation1 [shape = 'u32[144,128]{1,0:T(1,128)}', space=vmem, size = 0x12000, scoped, tag = 'internal scratch']
  %s0 = inlined_call_operand.vmem [shape: s32[2,24], index: 0, kind: input, shape index: {}]
  %s1 = inlined_call_operand.hbm [shape: bf16[640,128], index: 1, kind: input, shape index: {}]
  %s2 = inlined_call_operand.hbm [shape: f32[24,128], index: 2, kind: input, shape index: {}]
  %s3 = inlined_call_operand.hbm [shape: f32[2,128], index: 3, kind: output, shape index: {}]
  %s4 = sld [smem:[#allocation0]]
  $region30: #{cnn_forward.1} parent=0
    _
  %s6 = ssub.s32 1, %s4
  %s7 = scalar_select 0, %s6, %s4
  $region1: #{cnn_forward.1} parent=0
    #allocation2 [shape = 'u8[163840]{0}', space=vmem, size = 0x28000, scoped, tag = 'input window, operand 1, single buffered']
    #allocation3 [shape = 's32[1]{0}', space=sflag, size = 0x4, scoped, tag = 'scoped memory for cnn_forward.1']
    #allocation4 [shape = 's32[1]{0}', space=sflag, size = 0x4, scoped, tag = 'scoped memory for cnn_forward.1']
    #allocation5 [shape = 'u8[12288]{0}', space=vmem, size = 0x3000, scoped, tag = 'input window, operand 2, single buffered']
    #allocation6 [shape = 's32[1]{0}', space=sflag, size = 0x4, scoped, tag = 'scoped memory for cnn_forward.1']
    #allocation7 [shape = 'u8[1024]{0}', space=vmem, size = 0x400, scoped, tag = 'output window, operand 0, single buffered']
    %8 = vsyncpa [#allocation3], 0
    %9 = vsyncpa [#allocation6], 0
    %10 = vsyncpa [#allocation4], 0
    // Predicated region
    $region2: #{cnn_forward.1} parent=1 // pred_check
      _
    $region3: #{cnn_forward.1} parent=1 // pred_check_branch
      %12 = sbr.rel (0) target = $region5
    $region4: #{cnn_forward.1} parent=1 // pred_region
      _
    $region5: #{cnn_forward.1} parent=1 // pred_fallthru
      _
    // Predicated region
    $region6: #{cnn_forward.1} parent=1 // pred_check
      _
    $region7: #{cnn_forward.1} parent=1 // pred_check_branch
      %14 = sbr.rel (0) target = $region9
    $region8: #{cnn_forward.1} parent=1 // pred_region
      %s16 = ssub.s32 5120, 5120
      %17 = vsyncadd [#allocation3], %s16
      %s18 = sshll.u32 [#allocation2], 4
      %s19 = int_to_ptr.vmem [resolvable:$true] %s18
      %24 = dma.hbm_to_vmem [thread:$0]  %s1, 5120, %s19, [#allocation3], 64, 64, 4
    $region9: #{cnn_forward.1} parent=1 // pred_fallthru
      _
    // Predicated region
    $region10: #{cnn_forward.1} parent=1 // pred_check
      _
    $region11: #{cnn_forward.1} parent=1 // pred_check_branch
      %26 = sbr.rel (0) target = $region13
    $region12: #{cnn_forward.1} parent=1 // pred_region
      %s28 = ssub.s32 384, 384
      %29 = vsyncadd [#allocation6], %s28
      %s30 = sshll.u32 [#allocation5], 4
      %s31 = int_to_ptr.vmem [resolvable:$true] %s30
      %36 = dma.hbm_to_vmem [thread:$0]  %s2, 384, %s31, [#allocation6], 128, 128, 8
    $region13: #{cnn_forward.1} parent=1 // pred_fallthru
      _
    // Predicated region
    $region14: #{cnn_forward.1} parent=1 // pred_check
      _
    $region15: #{cnn_forward.1} parent=1 // pred_check_branch
      %38 = sbr.rel (0) target = $region17
    $region16: #{cnn_forward.1} parent=1 // pred_region
      %39 = dma.done [#allocation3], 5120
    $region17: #{cnn_forward.1} parent=1 // pred_fallthru
      _
    // Predicated region
    $region18: #{cnn_forward.1} parent=1 // pred_check
      _
    $region19: #{cnn_forward.1} parent=1 // pred_check_branch
      %41 = sbr.rel (0) target = $region21
    $region20: #{cnn_forward.1} parent=1 // pred_region
      %42 = dma.done [#allocation6], 384
    $region21: #{cnn_forward.1} parent=1 // pred_fallthru
      _
    %v44 = vld [vmem:[%s0] sm:$0x3]
    %v45 = vld [vmem:[#allocation5] sm:$0xff]
    %v46 = vld [vmem:[#allocation5 + $0x8] sm:$0xff]
    %v47 = vld [vmem:[#allocation5 + $0x10] sm:$0xff]
    %v48 = vlaneseq
    %v49 = vand.u32 %v48, 127
    %v50 = vlaneseq
    %v51 = vshrl.u32 %v50, 7
    %v52 = vsub.s32 0, %v51
    %v53 = vrot.slane %v44, %v52
    %55 = vbcast.lane.b32.xlu0 %v53, 256
    %v56 = vpop.permute.xlu0 %55
    %s58 = sor.u32 256, 8
    %59 = vbcast.lane.b32.xlu0 %v53, %s58
    %v60 = vpop.permute.xlu0 %59
    %v61 = vlaneseq
    %v62 = vshrl.u32 %v61, 7
    %v63 = vsub.s32 1, %v62
    %v64 = vrot.slane %v44, %v63
    %66 = vbcast.lane.b32.xlu0 %v64, 256
    %v67 = vpop.permute.xlu0 %66
    %s69 = sor.u32 256, 8
    %70 = vbcast.lane.b32.xlu0 %v64, %s69
    %v71 = vpop.permute.xlu0 %70
    %vm72 = vcmp.eq.s32.totalorder %v56, %v49
    %vm73 = vcmp.eq.s32.totalorder %v60, %v49
    %vm74 = vcmp.eq.s32.totalorder %v67, %v49
    %vm75 = vcmp.eq.s32.totalorder %v71, %v49
    %v76 = vsel %vm72, 1, 0
    %v77 = vsel %vm73, 1, 0
    %v78 = vsel %vm74, 1, 0
    %v79 = vsel %vm75, 1, 0
    %v80 = vcvt.s32.f32 %v76
    %v81 = vcvt.s32.f32 %v77
    %v82 = vcvt.s32.f32 %v78
    %v83 = vcvt.s32.f32 %v79
    %s85 = sor.u32 256, 1
    %86 = vbcast.lane.b32.xlu0 %v53, %s85
    %v87 = vpop.permute.xlu0 %86
    %s89 = sor.u32 256, 9
    %90 = vbcast.lane.b32.xlu0 %v53, %s89
    %v91 = vpop.permute.xlu0 %90
    %s93 = sor.u32 256, 1
    %94 = vbcast.lane.b32.xlu0 %v64, %s93
    %v95 = vpop.permute.xlu0 %94
    %s97 = sor.u32 256, 9
    %98 = vbcast.lane.b32.xlu0 %v64, %s97
    %v99 = vpop.permute.xlu0 %98
    %vm100 = vcmp.eq.s32.totalorder %v87, %v49
    %vm101 = vcmp.eq.s32.totalorder %v91, %v49
    %vm102 = vcmp.eq.s32.totalorder %v95, %v49
    %vm103 = vcmp.eq.s32.totalorder %v99, %v49
    %v104 = vsel %vm100, 1, 0
    %v105 = vsel %vm101, 1, 0
    %v106 = vsel %vm102, 1, 0
    %v107 = vsel %vm103, 1, 0
    %v108 = vcvt.s32.f32 %v104
    %v109 = vcvt.s32.f32 %v105
    %v110 = vcvt.s32.f32 %v106
    %v111 = vcvt.s32.f32 %v107
    %s113 = sor.u32 256, 2
    %114 = vbcast.lane.b32.xlu0 %v53, %s113
    %v115 = vpop.permute.xlu0 %114
    %s117 = sor.u32 256, 10
    %118 = vbcast.lane.b32.xlu0 %v53, %s117
    %v119 = vpop.permute.xlu0 %118
    %s121 = sor.u32 256, 2
    %122 = vbcast.lane.b32.xlu0 %v64, %s121
    %v123 = vpop.permute.xlu0 %122
    %s125 = sor.u32 256, 10
    %126 = vbcast.lane.b32.xlu0 %v64, %s125
    %v127 = vpop.permute.xlu0 %126
    %vm128 = vcmp.eq.s32.totalorder %v115, %v49
    %vm129 = vcmp.eq.s32.totalorder %v119, %v49
    %vm130 = vcmp.eq.s32.totalorder %v123, %v49
    %vm131 = vcmp.eq.s32.totalorder %v127, %v49
    %v132 = vsel %vm128, 1, 0
    %v133 = vsel %vm129, 1, 0
    %v134 = vsel %vm130, 1, 0
    %v135 = vsel %vm131, 1, 0
    %v136 = vcvt.s32.f32 %v132
    %v137 = vcvt.s32.f32 %v133
    %v138 = vcvt.s32.f32 %v134
    %v139 = vcvt.s32.f32 %v135
    %s141 = sor.u32 256, 3
    %142 = vbcast.lane.b32.xlu0 %v53, %s141
    %v143 = vpop.permute.xlu0 %142
    %s145 = sor.u32 256, 11
    %146 = vbcast.lane.b32.xlu0 %v53, %s145
    %v147 = vpop.permute.xlu0 %146
    %s149 = sor.u32 256, 3
    %150 = vbcast.lane.b32.xlu0 %v64, %s149
    %v151 = vpop.permute.xlu0 %150
    %s153 = sor.u32 256, 11
    %154 = vbcast.lane.b32.xlu0 %v64, %s153
    %v155 = vpop.permute.xlu0 %154
    %vm156 = vcmp.eq.s32.totalorder %v143, %v49
    %vm157 = vcmp.eq.s32.totalorder %v147, %v49
    %vm158 = vcmp.eq.s32.totalorder %v151, %v49
    %vm159 = vcmp.eq.s32.totalorder %v155, %v49
    %v160 = vsel %vm156, 1, 0
    %v161 = vsel %vm157, 1, 0
    %v162 = vsel %vm158, 1, 0
    %v163 = vsel %vm159, 1, 0
    %v164 = vcvt.s32.f32 %v160
    %v165 = vcvt.s32.f32 %v161
    %v166 = vcvt.s32.f32 %v162
    %v167 = vcvt.s32.f32 %v163
    %v168 = vpack.c.bf16 %v81, %v80
    %v169 = vpack.c.bf16 %v109, %v108
    %v170 = vpack.c.bf16 %v137, %v136
    %v171 = vpack.c.bf16 %v165, %v164
    %v172 = vpack.c.bf16 %v83, %v82
    %v173 = vpack.c.bf16 %v111, %v110
    %v174 = vpack.c.bf16 %v139, %v138
    %v175 = vpack.c.bf16 %v167, %v166
    %v176 = vld [vmem:[#allocation2] sm:$0xf]
    %v177 = vld [vmem:[#allocation2 + $0x4] sm:$0xf]
    %v178 = vld [vmem:[#allocation2 + $0x8] sm:$0xf]
    %v179 = vld [vmem:[#allocation2 + $0xc] sm:$0xf]
    %v180 = vld [vmem:[#allocation2 + $0x10] sm:$0xf]
    %v181 = vld [vmem:[#allocation2 + $0x14] sm:$0xf]
    %v182 = vld [vmem:[#allocation2 + $0x18] sm:$0xf]
    %v183 = vld [vmem:[#allocation2 + $0x1c] sm:$0xf]
    %v184 = vld [vmem:[#allocation2 + $0x20] sm:$0xf]
    %v185 = vld [vmem:[#allocation2 + $0x24] sm:$0xf]
    %v186 = vld [vmem:[#allocation2 + $0x28] sm:$0xf]
    %v187 = vld [vmem:[#allocation2 + $0x2c] sm:$0xf]
    %v188 = vld [vmem:[#allocation2 + $0x30] sm:$0xf]
    %v189 = vld [vmem:[#allocation2 + $0x34] sm:$0xf]
    %v190 = vld [vmem:[#allocation2 + $0x38] sm:$0xf]
    %v191 = vld [vmem:[#allocation2 + $0x3c] sm:$0xf]
    %v192 = vld [vmem:[#allocation2 + $0x40] sm:$0xf]
    %v193 = vld [vmem:[#allocation2 + $0x44] sm:$0xf]
    %v194 = vld [vmem:[#allocation2 + $0x48] sm:$0xf]
    %v195 = vld [vmem:[#allocation2 + $0x4c] sm:$0xf]
    %v196 = vld [vmem:[#allocation2 + $0x50] sm:$0xf]
    %v197 = vld [vmem:[#allocation2 + $0x54] sm:$0xf]
    %v198 = vld [vmem:[#allocation2 + $0x58] sm:$0xf]
    %v199 = vld [vmem:[#allocation2 + $0x5c] sm:$0xf]
    %v200 = vld [vmem:[#allocation2 + $0x60] sm:$0xf]
    %v201 = vld [vmem:[#allocation2 + $0x64] sm:$0xf]
    %v202 = vld [vmem:[#allocation2 + $0x68] sm:$0xf]
    %v203 = vld [vmem:[#allocation2 + $0x6c] sm:$0xf]
    %v204 = vld [vmem:[#allocation2 + $0x70] sm:$0xf]
    %v205 = vld [vmem:[#allocation2 + $0x74] sm:$0xf]
    %v206 = vld [vmem:[#allocation2 + $0x78] sm:$0xf]
    %v207 = vld [vmem:[#allocation2 + $0x7c] sm:$0xf]
    %v208 = vld [vmem:[#allocation2 + $0x80] sm:$0xf]
    %v209 = vld [vmem:[#allocation2 + $0x84] sm:$0xf]
    %v210 = vld [vmem:[#allocation2 + $0x88] sm:$0xf]
    %v211 = vld [vmem:[#allocation2 + $0x8c] sm:$0xf]
    %v212 = vld [vmem:[#allocation2 + $0x90] sm:$0xf]
    %v213 = vld [vmem:[#allocation2 + $0x94] sm:$0xf]
    %v214 = vld [vmem:[#allocation2 + $0x98] sm:$0xf]
    %v215 = vld [vmem:[#allocation2 + $0x9c] sm:$0xf]
    %v216 = vld [vmem:[#allocation2 + $0xa0] sm:$0xf]
    %v217 = vld [vmem:[#allocation2 + $0xa4] sm:$0xf]
    %v218 = vld [vmem:[#allocation2 + $0xa8] sm:$0xf]
    %v219 = vld [vmem:[#allocation2 + $0xac] sm:$0xf]
    %v220 = vld [vmem:[#allocation2 + $0xb0] sm:$0xf]
    %v221 = vld [vmem:[#allocation2 + $0xb4] sm:$0xf]
    %v222 = vld [vmem:[#allocation2 + $0xb8] sm:$0xf]
    %v223 = vld [vmem:[#allocation2 + $0xbc] sm:$0xf]
    %v224 = vld [vmem:[#allocation2 + $0xc0] sm:$0xf]
    %v225 = vld [vmem:[#allocation2 + $0xc4] sm:$0xf]
    %v226 = vld [vmem:[#allocation2 + $0xc8] sm:$0xf]
    %v227 = vld [vmem:[#allocation2 + $0xcc] sm:$0xf]
    %v228 = vld [vmem:[#allocation2 + $0xd0] sm:$0xf]
    %v229 = vld [vmem:[#allocation2 + $0xd4] sm:$0xf]
    %v230 = vld [vmem:[#allocation2 + $0xd8] sm:$0xf]
    %v231 = vld [vmem:[#allocation2 + $0xdc] sm:$0xf]
    %v232 = vld [vmem:[#allocation2 + $0xe0] sm:$0xf]
    %v233 = vld [vmem:[#allocation2 + $0xe4] sm:$0xf]
    %v234 = vld [vmem:[#allocation2 + $0xe8] sm:$0xf]
    %v235 = vld [vmem:[#allocation2 + $0xec] sm:$0xf]
    %v236 = vld [vmem:[#allocation2 + $0xf0] sm:$0xf]
    %v237 = vld [vmem:[#allocation2 + $0xf4] sm:$0xf]
    %v238 = vld [vmem:[#allocation2 + $0xf8] sm:$0xf]
    %v239 = vld [vmem:[#allocation2 + $0xfc] sm:$0xf]
    %v240 = vlaneseq
    %v241 = vshrl.u32 %v240, 7
    %v242 = vsub.s32 0, %v241
    %v243 = vrot.slane %v47, %v242
    %v308 = vunpack.c.l.b16 %v176
    %v309 = vunpack.c.l.b16 %v177
    %v310 = vunpack.c.l.b16 %v178
    %v311 = vunpack.c.l.b16 %v179
    %v312 = vunpack.c.l.b16 %v180
    %v313 = vunpack.c.l.b16 %v181
    %v314 = vunpack.c.l.b16 %v182
    %v315 = vunpack.c.l.b16 %v183
    %v316 = vunpack.c.l.b16 %v184
    %v317 = vunpack.c.l.b16 %v185
    %v318 = vunpack.c.l.b16 %v186
    %v319 = vunpack.c.l.b16 %v187
    %v320 = vunpack.c.l.b16 %v188
    %v321 = vunpack.c.l.b16 %v189
    %v322 = vunpack.c.l.b16 %v190
    %v323 = vunpack.c.l.b16 %v191
    %v324 = vunpack.c.l.b16 %v192
    %v325 = vunpack.c.l.b16 %v193
    %v326 = vunpack.c.l.b16 %v194
    %v327 = vunpack.c.l.b16 %v195
    %v328 = vunpack.c.l.b16 %v196
    %v329 = vunpack.c.l.b16 %v197
    %v330 = vunpack.c.l.b16 %v198
    %v331 = vunpack.c.l.b16 %v199
    %v332 = vunpack.c.l.b16 %v200
    %v333 = vunpack.c.l.b16 %v201
    %v334 = vunpack.c.l.b16 %v202
    %v335 = vunpack.c.l.b16 %v203
    %v336 = vunpack.c.l.b16 %v204
    %v337 = vunpack.c.l.b16 %v205
    %v338 = vunpack.c.l.b16 %v206
    %v339 = vunpack.c.l.b16 %v207
    %v340 = vunpack.c.l.b16 %v208
    %v341 = vunpack.c.l.b16 %v209
    %v342 = vunpack.c.l.b16 %v210
    %v343 = vunpack.c.l.b16 %v211
    %v344 = vunpack.c.l.b16 %v212
    %v345 = vunpack.c.l.b16 %v213
    %v346 = vunpack.c.l.b16 %v214
    %v347 = vunpack.c.l.b16 %v215
    %v348 = vunpack.c.l.b16 %v216
    %v349 = vunpack.c.l.b16 %v217
    %v350 = vunpack.c.l.b16 %v218
    %v351 = vunpack.c.l.b16 %v219
    %v352 = vunpack.c.l.b16 %v220
    %v353 = vunpack.c.l.b16 %v221
    %v354 = vunpack.c.l.b16 %v222
    %v355 = vunpack.c.l.b16 %v223
    %v356 = vunpack.c.l.b16 %v224
    %v357 = vunpack.c.l.b16 %v225
    %v358 = vunpack.c.l.b16 %v226
    %v359 = vunpack.c.l.b16 %v227
    %v360 = vunpack.c.l.b16 %v228
    %v361 = vunpack.c.l.b16 %v229
    %v362 = vunpack.c.l.b16 %v230
    %v363 = vunpack.c.l.b16 %v231
    %v364 = vunpack.c.l.b16 %v232
    %v365 = vunpack.c.l.b16 %v233
    %v366 = vunpack.c.l.b16 %v234
    %v367 = vunpack.c.l.b16 %v235
    %v368 = vunpack.c.l.b16 %v236
    %v369 = vunpack.c.l.b16 %v237
    %v370 = vunpack.c.l.b16 %v238
    %v371 = vunpack.c.l.b16 %v239
    %v372 = vpack.c.b16 %v309, %v308
    %v373 = vpack.c.b16 %v311, %v310
    %v374 = vpack.c.b16 %v313, %v312
    %v375 = vpack.c.b16 %v315, %v314
    %v376 = vpack.c.b16 %v317, %v316
    %v377 = vpack.c.b16 %v319, %v318
    %v378 = vpack.c.b16 %v321, %v320
    %v379 = vpack.c.b16 %v323, %v322
    %v380 = vpack.c.b16 %v325, %v324
    %v381 = vpack.c.b16 %v327, %v326
    %v382 = vpack.c.b16 %v329, %v328
    %v383 = vpack.c.b16 %v331, %v330
    %v384 = vpack.c.b16 %v333, %v332
    %v385 = vpack.c.b16 %v335, %v334
    %v386 = vpack.c.b16 %v337, %v336
    %v387 = vpack.c.b16 %v339, %v338
    %v388 = vpack.c.b16 %v341, %v340
    %v389 = vpack.c.b16 %v343, %v342
    %v390 = vpack.c.b16 %v345, %v344
    %v391 = vpack.c.b16 %v347, %v346
    %v392 = vpack.c.b16 %v349, %v348
    %v393 = vpack.c.b16 %v351, %v350
    %v394 = vpack.c.b16 %v353, %v352
    %v395 = vpack.c.b16 %v355, %v354
    %v396 = vpack.c.b16 %v357, %v356
    %v397 = vpack.c.b16 %v359, %v358
    %v398 = vpack.c.b16 %v361, %v360
    %v399 = vpack.c.b16 %v363, %v362
    %v400 = vpack.c.b16 %v365, %v364
    %v401 = vpack.c.b16 %v367, %v366
    %v402 = vpack.c.b16 %v369, %v368
    %v403 = vpack.c.b16 %v371, %v370
    %436 = vmatprep.subr.bf16.mxu0 0
    %437 = vmatpush1.bf16.msra.mxu0 %v379
    %438 = vmatprep.subr.bf16.mxu0 0
    %439 = vmatpush1.bf16.msra.mxu0 %v378
    %440 = vmatprep.subr.bf16.mxu0 0
    %441 = vmatpush1.bf16.msra.mxu0 %v377
    %442 = vmatprep.subr.bf16.mxu0 0
    %443 = vmatpush1.bf16.msra.mxu0 %v376
    %444 = vmatprep.subr.bf16.mxu0 0
    %445 = vmatpush1.bf16.msra.mxu0 %v375
    %446 = vmatprep.subr.bf16.mxu0 0
    %447 = vmatpush1.bf16.msra.mxu0 %v374
    %448 = vmatprep.subr.bf16.mxu0 0
    %449 = vmatpush1.bf16.msra.mxu0 %v373
    %450 = vmatprep.subr.bf16.mxu0 0
    %451 = vmatpush1.bf16.msra.mxu0 %v372
    %452 = vmatprep.subr.bf16.mxu0 0
    %453 = vmatpush2.bf16.msra.mxu0 %v387
    %454 = vmatprep.subr.bf16.mxu0 0
    %455 = vmatpush2.bf16.msra.mxu0 %v386
    %456 = vmatprep.subr.bf16.mxu0 0
    %457 = vmatpush2.bf16.msra.mxu0 %v385
    %458 = vmatprep.subr.bf16.mxu0 0
    %459 = vmatpush2.bf16.msra.mxu0 %v384
    %460 = vmatprep.subr.bf16.mxu0 0
    %461 = vmatpush2.bf16.msra.mxu0 %v383
    %462 = vmatprep.subr.bf16.mxu0 0
    %463 = vmatpush2.bf16.msra.mxu0 %v382
    %464 = vmatprep.subr.bf16.mxu0 0
    %465 = vmatpush2.bf16.msra.mxu0 %v381
    %466 = vmatprep.subr.bf16.mxu0 0
    %467 = vmatpush2.bf16.msra.mxu0 %v380
    %468 = vmatprep.mubr.bf16.mxu0 %v169
    %469 = vmatmul.mubr.bf16.gmra.mxu0 %v168
    %v470 = vpop.f32.mrf.mxu0
    %v471 = vadd.f32 %v243, %v470
    %v472 = vpop.f32.mrf.mxu0
    %v473 = vpop.f32.mrf.mxu0
    %v474 = vadd.f32 %v243, %v473
    %v475 = vpop.f32.mrf.mxu0
    %476 = vmatprep.mubr.bf16.mxu0 %v173
    %477 = vmatmul.mubr.bf16.gmra.mxu0 %v172
    %v478 = vpop.f32.mrf.mxu0
    %v479 = vadd.f32 %v243, %v478
    %v480 = vpop.f32.mrf.mxu0
    %v481 = vpop.f32.mrf.mxu0
    %v482 = vadd.f32 %v243, %v481
    %v483 = vpop.f32.mrf.mxu0
    %484 = vdwg.mxu0
    %485 = vmatprep.subr.bf16.mxu0 0
    %486 = vmatpush1.bf16.msra.mxu0 %v395
    %487 = vmatprep.subr.bf16.mxu0 0
    %488 = vmatpush1.bf16.msra.mxu0 %v394
    %489 = vmatprep.subr.bf16.mxu0 0
    %490 = vmatpush1.bf16.msra.mxu0 %v393
    %491 = vmatprep.subr.bf16.mxu0 0
    %492 = vmatpush1.bf16.msra.mxu0 %v392
    %493 = vmatprep.subr.bf16.mxu0 0
    %494 = vmatpush1.bf16.msra.mxu0 %v391
    %495 = vmatprep.subr.bf16.mxu0 0
    %496 = vmatpush1.bf16.msra.mxu0 %v390
    %497 = vmatprep.subr.bf16.mxu0 0
    %498 = vmatpush1.bf16.msra.mxu0 %v389
    %499 = vmatprep.subr.bf16.mxu0 0
    %500 = vmatpush1.bf16.msra.mxu0 %v388
    %501 = vmatprep.subr.bf16.mxu0 0
    %502 = vmatpush2.bf16.msra.mxu0 %v403
    %503 = vmatprep.subr.bf16.mxu0 0
    %504 = vmatpush2.bf16.msra.mxu0 %v402
    %505 = vmatprep.subr.bf16.mxu0 0
    %506 = vmatpush2.bf16.msra.mxu0 %v401
    %507 = vmatprep.subr.bf16.mxu0 0
    %508 = vmatpush2.bf16.msra.mxu0 %v400
    %509 = vmatprep.subr.bf16.mxu0 0
    %510 = vmatpush2.bf16.msra.mxu0 %v399
    %511 = vmatprep.subr.bf16.mxu0 0
    %512 = vmatpush2.bf16.msra.mxu0 %v398
    %513 = vmatprep.subr.bf16.mxu0 0
    %514 = vmatpush2.bf16.msra.mxu0 %v397
    %515 = vmatprep.subr.bf16.mxu0 0
    %516 = vmatpush2.bf16.msra.mxu0 %v396
    %517 = vmatprep.mubr.bf16.mxu0 %v171
    %518 = vmatmul.mubr.bf16.gmra.mxu0 %v170
    %v519 = vpop.f32.mrf.mxu0
    %v520 = vadd.f32 %v471, %v519
    %v521 = vpop.f32.mrf.mxu0
    %v522 = vpop.f32.mrf.mxu0
    %v523 = vadd.f32 %v474, %v522
    %v524 = vpop.f32.mrf.mxu0
    %525 = vmatprep.mubr.bf16.mxu0 %v175
    %526 = vmatmul.mubr.bf16.gmra.mxu0 %v174
    %v527 = vpop.f32.mrf.mxu0
    %v528 = vadd.f32 %v479, %v527
    %v529 = vpop.f32.mrf.mxu0
    %v530 = vpop.f32.mrf.mxu0
    %v531 = vadd.f32 %v482, %v530
    %v532 = vpop.f32.mrf.mxu0
    %533 = vdwg.mxu0
    %v534 = vmax.f32 %v520, 0.0
    %v535 = vmax.f32 %v523, 0.0
    %v536 = vmax.f32 %v528, 0.0
    %v537 = vmax.f32 %v531, 0.0
    %v538 = vmul.f32 %v534, %v45
    %v539 = vmul.f32 %v535, %v46
    %v540 = vmul.f32 %v536, %v45
    %v541 = vmul.f32 %v537, %v46
    %v542 = vmax.f32 %v538, %v539
    %v543 = vrot.slane %v542, 4
    %v544 = vmax.f32 %v542, %v543
    %v545 = vrot.slane %v544, 2
    %v546 = vmax.f32 %v544, %v545
    %v547 = vrot.slane %v546, 1
    %v548 = vmax.f32 %v546, %v547
    %v549 = vmax.f32 %v540, %v541
    %v550 = vrot.slane %v549, 4
    %v551 = vmax.f32 %v549, %v550
    %v552 = vrot.slane %v551, 2
    %v553 = vmax.f32 %v551, %v552
    %v554 = vrot.slane %v553, 1
    %v555 = vmax.f32 %v553, %v554
    %v556 = vld [vmem:[#allocation2 + $0x100] sm:$0xf]
    %v557 = vld [vmem:[#allocation2 + $0x104] sm:$0xf]
    %v558 = vld [vmem:[#allocation2 + $0x108] sm:$0xf]
    %v559 = vld [vmem:[#allocation2 + $0x10c] sm:$0xf]
    %v560 = vld [vmem:[#allocation2 + $0x110] sm:$0xf]
    %v561 = vld [vmem:[#allocation2 + $0x114] sm:$0xf]
    %v562 = vld [vmem:[#allocation2 + $0x118] sm:$0xf]
    %v563 = vld [vmem:[#allocation2 + $0x11c] sm:$0xf]
    %v564 = vld [vmem:[#allocation2 + $0x120] sm:$0xf]
    %v565 = vld [vmem:[#allocation2 + $0x124] sm:$0xf]
    %v566 = vld [vmem:[#allocation2 + $0x128] sm:$0xf]
    %v567 = vld [vmem:[#allocation2 + $0x12c] sm:$0xf]
    %v568 = vld [vmem:[#allocation2 + $0x130] sm:$0xf]
    %v569 = vld [vmem:[#allocation2 + $0x134] sm:$0xf]
    %v570 = vld [vmem:[#allocation2 + $0x138] sm:$0xf]
    %v571 = vld [vmem:[#allocation2 + $0x13c] sm:$0xf]
    %v572 = vpack.c.bf16 %v548, %v548
    %v573 = vpack.c.bf16 %v555, %v555
    %v574 = vlaneseq
    %v575 = vshrl.u32 %v574, 7
    %v576 = vsub.s32 1, %v575
    %v577 = vrot.slane %v47, %v576
    %v580 = vunpack.c.l.b16 %v572
    %v581 = vunpack.c.l.b16 %v573
    %vm582 = vcmask 1041409
    %v583 = vsel %vm582, %v581, %v580
    %v584 = vpack.c.b16 %v583, %v583
    %v602 = vunpack.c.l.b16 %v556
    %v603 = vunpack.c.l.b16 %v557
    %v604 = vunpack.c.l.b16 %v558
    %v605 = vunpack.c.l.b16 %v559
    %v606 = vunpack.c.l.b16 %v560
    %v607 = vunpack.c.l.b16 %v561
    %v608 = vunpack.c.l.b16 %v562
    %v609 = vunpack.c.l.b16 %v563
    %v610 = vunpack.c.l.b16 %v564
    %v611 = vunpack.c.l.b16 %v565
    %v612 = vunpack.c.l.b16 %v566
    %v613 = vunpack.c.l.b16 %v567
    %v614 = vunpack.c.l.b16 %v568
    %v615 = vunpack.c.l.b16 %v569
    %v616 = vunpack.c.l.b16 %v570
    %v617 = vunpack.c.l.b16 %v571
    %v618 = vpack.c.b16 %v603, %v602
    %v619 = vpack.c.b16 %v605, %v604
    %v620 = vpack.c.b16 %v607, %v606
    %v621 = vpack.c.b16 %v609, %v608
    %v622 = vpack.c.b16 %v611, %v610
    %v623 = vpack.c.b16 %v613, %v612
    %v624 = vpack.c.b16 %v615, %v614
    %v625 = vpack.c.b16 %v617, %v616
    %634 = vmatprep.subr.bf16.mxu0 0
    %635 = vmatpush1.bf16.msra.mxu0 %v625
    %636 = vmatprep.subr.bf16.mxu0 0
    %637 = vmatpush1.bf16.msra.mxu0 %v624
    %638 = vmatprep.subr.bf16.mxu0 0
    %639 = vmatpush1.bf16.msra.mxu0 %v623
    %640 = vmatprep.subr.bf16.mxu0 0
    %641 = vmatpush1.bf16.msra.mxu0 %v622
    %642 = vmatprep.subr.bf16.mxu0 0
    %643 = vmatpush1.bf16.msra.mxu0 %v621
    %644 = vmatprep.subr.bf16.mxu0 0
    %645 = vmatpush1.bf16.msra.mxu0 %v620
    %646 = vmatprep.subr.bf16.mxu0 0
    %647 = vmatpush1.bf16.msra.mxu0 %v619
    %648 = vmatprep.subr.bf16.mxu0 0
    %649 = vmatpush1.bf16.msra.mxu0 %v618
    %650 = vmatprep.subr.bf16.mxu0 0
    %651 = vmatpush2.bf16.msra.mxu0 0
    %652 = vmatprep.subr.bf16.mxu0 0
    %653 = vmatpush2.bf16.msra.mxu0 0
    %654 = vmatprep.subr.bf16.mxu0 0
    %655 = vmatpush2.bf16.msra.mxu0 0
    %656 = vmatprep.subr.bf16.mxu0 0
    %657 = vmatpush2.bf16.msra.mxu0 0
    %658 = vmatprep.subr.bf16.mxu0 0
    %659 = vmatpush2.bf16.msra.mxu0 0
    %660 = vmatprep.subr.bf16.mxu0 0
    %661 = vmatpush2.bf16.msra.mxu0 0
    %662 = vmatprep.subr.bf16.mxu0 0
    %663 = vmatpush2.bf16.msra.mxu0 0
    %664 = vmatprep.subr.bf16.mxu0 0
    %665 = vmatpush2.bf16.msra.mxu0 0
    %666 = vmatprep.mubr.bf16.mxu0 0
    %667 = vmatmul.mubr.bf16.gmra.mxu0 %v584
    %v668 = vpop.f32.mrf.mxu0
    %v669 = vadd.f32 %v577, %v668
    %v670 = vpop.f32.mrf.mxu0
    %v671 = vpop.f32.mrf.mxu0
    %v672 = vpop.f32.mrf.mxu0
    %673 = vdwg.mxu0
    %674 = vst [vmem:[#allocation7] sm:$0x3] %v669
    // Predicated region
    $region22: #{cnn_forward.1} parent=1 // pred_check
      _
    $region23: #{cnn_forward.1} parent=1 // pred_check_branch
      %676 = sbr.rel (0) target = $region25
    $region24: #{cnn_forward.1} parent=1 // pred_region
      %s678 = ssub.s32 32, 32
      %679 = vsyncadd [#allocation4], %s678
      %s681 = sshll.u32 [#allocation7], 4
      %s682 = int_to_ptr.vmem [resolvable:$true] %s681
      %684 = dma.vmem_to_hbm [thread:$0]  %s682, 32, %s3, [#allocation4]
    $region25: #{cnn_forward.1} parent=1 // pred_fallthru
      _
    // Predicated region
    $region26: #{cnn_forward.1} parent=1 // pred_check
      _
    $region27: #{cnn_forward.1} parent=1 // pred_check_branch
      %686 = sbr.rel (0) target = $region29
    $region28: #{cnn_forward.1} parent=1 // pred_region
      %687 = dma.done [#allocation4], 32
    $region29: #{cnn_forward.1} parent=1 // pred_fallthru
      _
    %688 = vsyncpa [#allocation3], 1
    %689 = vsyncpa [#allocation6], 1
    %690 = vsyncpa [#allocation4], 1

</llo_original>
